<compile_context>
chip_gen: v7x
topology: tpu7x:2x2x1
jax: 0.10.0
libtpu: 0.0.40
codegen_flags: <defaults>
</compile_context>

<pallas_src>
import jax
import jax.numpy as jnp
from jax.experimental import pallas as pl
from jax.experimental.pallas import tpu as pltpu


def _round_up(v, m):
    return ((v + m - 1) // m) * m


def _conv1x1_kernel(x_ref, w_ref, b_ref, o_ref):
    # x_ref: (TILE_N, C_in, TILE_S)   w_ref: (C_out, C_in)   b_ref: (C_out, 1)
    # o_ref: (TILE_N, C_out, TILE_S)
    tile_n, c_in, _ = x_ref.shape
    bias = b_ref[...].astype(jnp.float32)                       # (C_out, 1)

    if tile_n == 1:
        # Spatial-tiled path (one image per step): single 2-D matmul on the MXU,
        # f32 accumulation, bias broadcast over lanes, one cast on store.
        acc = jnp.dot(w_ref[...], x_ref[0],
                      preferred_element_type=jnp.float32)       # (C_out, TILE_S)
        o_ref[0] = (acc + bias).astype(o_ref.dtype)
    else:
        # Batch-fused path (small images, small channel counts): pure VPU
        # broadcast-multiply-add over the (tiny) C_in axis — equivalent FLOPs,
        # avoids any transpose, and the kernel is HBM-bound anyway.
        x = x_ref[...].astype(jnp.float32)                      # (TILE_N, C_in, TILE_S)
        w = w_ref[...].astype(jnp.float32)                      # (C_out, C_in)
        acc = x[:, 0:1, :] * w[:, 0:1][None]                    # (TILE_N, C_out, TILE_S)
        for c in range(1, c_in):
            acc = acc + x[:, c:c + 1, :] * w[:, c:c + 1][None]
        o_ref[...] = (acc + bias[None, :, :]).astype(o_ref.dtype)


def _select_tiles(N, C_in, C_out, HW, itemsize, target_step_bytes):
    """Pick (tile_n, tile_s) so each grid step moves ~target_step_bytes of HBM traffic."""
    col_bytes = (C_in + C_out) * itemsize          # in+out bytes per spatial column
    want_cols = max(128, target_step_bytes // col_bytes)

    if HW >= want_cols or C_in > 16:
        # Large image (or large channels): tile spatial, one image per step (MXU path).
        tile_s = min(HW, max(128, (want_cols // 128) * 128))
        return 1, int(tile_s)

    # Small image, small channels: whole spatial per step, fuse images (VPU path).
    tile_n = int(max(1, min(N, want_cols // max(HW, 1))))
    if tile_n >= N and N > 1:
        # Keep >= 2 grid blocks for megacore if the halves are still MB-scale.
        half = pl.cdiv(N, 2)
        if half * HW * col_bytes >= (2 << 20):
            tile_n = int(half)
    return tile_n, HW


def conv1x1_pallas(x, weight, bias, *, target_step_bytes=8 << 20):
    """x: (N, C_in, H, W); weight: (C_out, C_in, 1, 1); bias: (C_out,). Returns (N, C_out, H, W)."""
    N, C_in, H, W = x.shape
    C_out = weight.shape[0]
    HW = H * W
    itemsize = jnp.dtype(x.dtype).itemsize

    w2 = weight.reshape(C_out, C_in)
    b2 = bias.reshape(C_out, 1)
    x2 = x.reshape(N, C_in, HW)          # free reshape (trailing dims), no pad/copy

    tile_n, tile_s = _select_tiles(N, C_in, C_out, HW, itemsize, target_step_bytes)
    grid = (pl.cdiv(N, tile_n), pl.cdiv(HW, tile_s))

    # VMEM budget: double-buffered in/out tiles (with (8,128) padding), f32
    # accumulator, resident weight/bias, headroom. Capped at 48 MiB (v7x = 64 MiB/TC).
    lane_s = _round_up(tile_s, 128)
    in_tile = tile_n * _round_up(C_in, 8) * lane_s * itemsize
    out_tile = tile_n * _round_up(C_out, 8) * lane_s * itemsize
    acc_tile = tile_n * _round_up(C_out, 8) * lane_s * 4
    resident = (_round_up(C_out, 8) * _round_up(C_in, 128)
                + _round_up(C_out, 8) * 128) * itemsize
    vmem_limit = 2 * (in_tile + out_tile) + acc_tile + resident + (4 << 20)
    vmem_limit = int(min(max(vmem_limit, 16 << 20), 48 << 20))

    out = pl.pallas_call(
        _conv1x1_kernel,
        out_shape=jax.ShapeDtypeStruct((N, C_out, HW), x.dtype),
        grid=grid,
        in_specs=[
            pl.BlockSpec((tile_n, C_in, tile_s), lambda n, s: (n, 0, s)),  # x tiles (pipelined)
            pl.BlockSpec((C_out, C_in), lambda n, s: (0, 0)),              # weight resident
            pl.BlockSpec((C_out, 1), lambda n, s: (0, 0)),                 # bias resident
        ],
        out_specs=pl.BlockSpec((tile_n, C_out, tile_s), lambda n, s: (n, 0, s)),
        compiler_params=pltpu.CompilerParams(
            dimension_semantics=("parallel", "parallel"),
            vmem_limit_bytes=vmem_limit,
        ),
    )(x2, w2, b2)

    return out.reshape(N, C_out, H, W)


def conv1x1_ref(x, weight, bias):
    """Pure-JAX reference mirroring Conv2d(kernel_size=1)."""
    w2 = weight.reshape(weight.shape[0], weight.shape[1]).astype(jnp.float32)
    y = jnp.einsum("nchw,oc->nohw", x.astype(jnp.float32), w2)
    y = y + bias.astype(jnp.float32)[None, :, None, None]
    return y.astype(x.dtype)


if __name__ == "__main__":
    key = jax.random.PRNGKey(0)

    def make_case(k, N, C_in, C_out, H, W):
        kx, kw, kb = jax.random.split(k, 3)
        bound = 1.0 / (C_in ** 0.5)
        x = jax.random.normal(kx, (N, C_in, H, W), dtype=jnp.float32)
        w = jax.random.uniform(kw, (C_out, C_in, 1, 1), jnp.float32, -bound, bound)
        b = jax.random.uniform(kb, (C_out,), jnp.float32, -bound, bound)
        return x, w, b

    k1, k2, k3 = jax.random.split(key, 3)

    # Case 1: module-default small shapes (batch=2, c_in=4, c_out=8, 16x16) —
    # batch-fused VPU path, single grid step.
    x, w, b = make_case(k1, 2, 4, 8, 16, 16)
    out = jax.block_until_ready(conv1x1_pallas(x, w, b))
    ref = conv1x1_ref(x, w, b)
    assert out.shape == (2, 8, 16, 16)
    assert jnp.allclose(out, ref, atol=1e-5, rtol=1e-5), "case 1 mismatch"

    # Case 2: force spatial tiling with a partial (masked) edge block — MXU path,
    # HW=400 not a multiple of 128, no wrapper pad/slice.
    x, w, b = make_case(k2, 1, 4, 8, 20, 20)
    out = jax.block_until_ready(conv1x1_pallas(x, w, b, target_step_bytes=1))
    ref = conv1x1_ref(x, w, b)
    assert jnp.allclose(out, ref, atol=1e-5, rtol=1e-5), "case 2 mismatch"

    # Case 3: batch-fused path with a partial batch block (N=3, tile_n=2).
    x, w, b = make_case(k3, 3, 4, 8, 8, 8)
    out = jax.block_until_ready(conv1x1_pallas(x, w, b, target_step_bytes=6240))
    ref = conv1x1_ref(x, w, b)
    assert jnp.allclose(out, ref, atol=1e-5, rtol=1e-5), "case 3 mismatch"

    print("KERNEL_OK")
</pallas_src>

<mosaic_0001>
module attributes {stable_mosaic.version = 11 : i64} {
  func.func @_conv1x1_kernel(%arg0: i32, %arg1: i32, %arg2: memref<2x4x256xf32, #tpu.memory_space<vmem>>, %arg3: memref<8x4xf32, #tpu.memory_space<vmem>>, %arg4: memref<8x1xf32, #tpu.memory_space<vmem>>, %arg5: memref<2x8x256xf32, #tpu.memory_space<vmem>>) attributes {dimension_semantics = [#tpu.dimension_semantics<parallel>, #tpu.dimension_semantics<parallel>], iteration_bounds = array<i64: 1, 1>, scalar_prefetch = 0 : i64, scratch_operands = 0 : i64, tpu.core_type = #tpu.core_type<tc>, window_params = [{transform_indices = @transform_0, window_bounds = array<i64: 2, 4, 256>}, {pipeline_mode = #tpu.pipeline_mode<synchronous>, transform_indices = @transform_1, window_bounds = array<i64: 8, 4>}, {pipeline_mode = #tpu.pipeline_mode<synchronous>, transform_indices = @transform_2, window_bounds = array<i64: 8, 1>}, {transform_indices = @transform_3, window_bounds = array<i64: 2, 8, 256>}]} {
    %c0 = arith.constant 0 : index
    %c0_0 = arith.constant 0 : index
    %0 = vector.load %arg4[%c0, %c0_0] : memref<8x1xf32, #tpu.memory_space<vmem>>, vector<8x1xf32>
    %c0_1 = arith.constant 0 : index
    %c0_2 = arith.constant 0 : index
    %c0_3 = arith.constant 0 : index
    %1 = vector.load %arg2[%c0_1, %c0_2, %c0_3] : memref<2x4x256xf32, #tpu.memory_space<vmem>>, vector<2x4x256xf32>
    %c0_4 = arith.constant 0 : index
    %c0_5 = arith.constant 0 : index
    %2 = vector.load %arg3[%c0_4, %c0_5] : memref<8x4xf32, #tpu.memory_space<vmem>>, vector<8x4xf32>
    %3 = vector.extract_strided_slice %1 {offsets = [0, 0, 0], sizes = [2, 1, 256], strides = [1, 1, 1]} : vector<2x4x256xf32> to vector<2x1x256xf32>
    %4 = vector.extract_strided_slice %2 {offsets = [0, 0], sizes = [8, 1], strides = [1, 1]} : vector<8x4xf32> to vector<8x1xf32>
    %5 = vector.shape_cast %4 : vector<8x1xf32> to vector<1x8x1xf32>
    %6 = vector.broadcast %3 : vector<2x1x256xf32> to vector<2x8x256xf32>
    %7 = vector.broadcast %5 : vector<1x8x1xf32> to vector<2x8x256xf32>
    %8 = arith.mulf %6, %7 : vector<2x8x256xf32>
    %9 = vector.extract_strided_slice %1 {offsets = [0, 1, 0], sizes = [2, 1, 256], strides = [1, 1, 1]} : vector<2x4x256xf32> to vector<2x1x256xf32>
    %10 = vector.extract_strided_slice %2 {offsets = [0, 1], sizes = [8, 1], strides = [1, 1]} : vector<8x4xf32> to vector<8x1xf32>
    %11 = vector.shape_cast %10 : vector<8x1xf32> to vector<1x8x1xf32>
    %12 = vector.broadcast %9 : vector<2x1x256xf32> to vector<2x8x256xf32>
    %13 = vector.broadcast %11 : vector<1x8x1xf32> to vector<2x8x256xf32>
    %14 = arith.mulf %12, %13 : vector<2x8x256xf32>
    %15 = arith.addf %8, %14 : vector<2x8x256xf32>
    %16 = vector.extract_strided_slice %1 {offsets = [0, 2, 0], sizes = [2, 1, 256], strides = [1, 1, 1]} : vector<2x4x256xf32> to vector<2x1x256xf32>
    %17 = vector.extract_strided_slice %2 {offsets = [0, 2], sizes = [8, 1], strides = [1, 1]} : vector<8x4xf32> to vector<8x1xf32>
    %18 = vector.shape_cast %17 : vector<8x1xf32> to vector<1x8x1xf32>
    %19 = vector.broadcast %16 : vector<2x1x256xf32> to vector<2x8x256xf32>
    %20 = vector.broadcast %18 : vector<1x8x1xf32> to vector<2x8x256xf32>
    %21 = arith.mulf %19, %20 : vector<2x8x256xf32>
    %22 = arith.addf %15, %21 : vector<2x8x256xf32>
    %23 = vector.extract_strided_slice %1 {offsets = [0, 3, 0], sizes = [2, 1, 256], strides = [1, 1, 1]} : vector<2x4x256xf32> to vector<2x1x256xf32>
    %24 = vector.extract_strided_slice %2 {offsets = [0, 3], sizes = [8, 1], strides = [1, 1]} : vector<8x4xf32> to vector<8x1xf32>
    %25 = vector.shape_cast %24 : vector<8x1xf32> to vector<1x8x1xf32>
    %26 = vector.broadcast %23 : vector<2x1x256xf32> to vector<2x8x256xf32>
    %27 = vector.broadcast %25 : vector<1x8x1xf32> to vector<2x8x256xf32>
    %28 = arith.mulf %26, %27 : vector<2x8x256xf32>
    %29 = arith.addf %22, %28 : vector<2x8x256xf32>
    %30 = vector.shape_cast %0 : vector<8x1xf32> to vector<1x8x1xf32>
    %31 = vector.broadcast %30 : vector<1x8x1xf32> to vector<2x8x256xf32>
    %32 = arith.addf %29, %31 : vector<2x8x256xf32>
    %c0_6 = arith.constant 0 : index
    %c0_7 = arith.constant 0 : index
    %c0_8 = arith.constant 0 : index
    %33 = vector.load %arg5[%c0_6, %c0_7, %c0_8] : memref<2x8x256xf32, #tpu.memory_space<vmem>>, vector<2x8x256xf32>
    tpu.vector_store %arg5[%c0_6, %c0_7, %c0_8], %32 {strides = array<i32>} : memref<2x8x256xf32, #tpu.memory_space<vmem>>, vector<2x8x256xf32>,
    return
  }
  func.func @transform_0(%arg0: i32, %arg1: i32) -> (i32, i32, i32) {
    %c0_i32 = arith.constant 0 : i32
    %c0_i32_0 = arith.constant 0 : i32
    return %arg0, %c0_i32, %arg1 : i32, i32, i32
  }
  func.func @transform_1(%arg0: i32, %arg1: i32) -> (i32, i32) {
    %c0_i32 = arith.constant 0 : i32
    %c0_i32_0 = arith.constant 0 : i32
    %c0_i32_1 = arith.constant 0 : i32
    return %c0_i32, %c0_i32_0 : i32, i32
  }
  func.func @transform_2(%arg0: i32, %arg1: i32) -> (i32, i32) {
    %c0_i32 = arith.constant 0 : i32
    %c0_i32_0 = arith.constant 0 : i32
    %c0_i32_1 = arith.constant 0 : i32
    return %c0_i32, %c0_i32_0 : i32, i32
  }
  func.func @transform_3(%arg0: i32, %arg1: i32) -> (i32, i32, i32) {
    %c0_i32 = arith.constant 0 : i32
    %c0_i32_0 = arith.constant 0 : i32
    return %arg0, %c0_i32, %arg1 : i32, i32, i32
  }
}

</mosaic_0001>

<llo_original>
// kernel: tpu_custom_call.1
$region0: #{tpu_custom_call.1}
  #allocation0 [shape = 'u32[]', space=smem, size = 0x4, offset = 0x4, fixed_abs, tag = 'smem constant byte address 0x4 - core index']
  #allocation1 [shape = 'u32[144,128]{1,0:T(1,128)}', space=vmem, size = 0x12000, scoped, tag = 'internal scratch']
  %s0 = inlined_call_operand.vmem [shape: f32[2,4,256], index: 0, kind: input, shape index: {}]
  %s1 = inlined_call_operand.vmem [shape: f32[8,4], index: 1, kind: input, shape index: {}]
  %s2 = inlined_call_operand.vmem [shape: f32[8,1], index: 2, kind: input, shape index: {}]
  %s3 = inlined_call_operand.hbm [shape: f32[2,8,256], index: 3, kind: output, shape index: {}]
  %s4 = sld [smem:[#allocation0]]
  $region22: #{tpu_custom_call.1} parent=0
    _
  %s6 = ssub.s32 1, %s4
  %s7 = scalar_select 0, %s6, %s4
  $region1: #{tpu_custom_call.1} parent=0
    #allocation2 [shape = 'u8[16384]{0}', space=vmem, size = 0x4000, scoped, tag = 'output window, operand 0, single buffered']
    #allocation3 [shape = 's32[1]{0}', space=sflag, size = 0x4, scoped, tag = 'scoped memory for tpu_custom_call.1']
    %8 = vsyncpa [#allocation3], 0
    // Predicated region
    $region2: #{tpu_custom_call.1} parent=1 // pred_check
      _
    $region3: #{tpu_custom_call.1} parent=1 // pred_check_branch
      %10 = sbr.rel (0) target = $region5
    $region4: #{tpu_custom_call.1} parent=1 // pred_region
      _
    $region5: #{tpu_custom_call.1} parent=1 // pred_fallthru
      _
    // Predicated region
    $region6: #{tpu_custom_call.1} parent=1 // pred_check
      _
    $region7: #{tpu_custom_call.1} parent=1 // pred_check_branch
      %12 = sbr.rel (0) target = $region9
    $region8: #{tpu_custom_call.1} parent=1 // pred_region
      _
    $region9: #{tpu_custom_call.1} parent=1 // pred_fallthru
      _
    // Predicated region
    $region10: #{tpu_custom_call.1} parent=1 // pred_check
      _
    $region11: #{tpu_custom_call.1} parent=1 // pred_check_branch
      %14 = sbr.rel (0) target = $region13
    $region12: #{tpu_custom_call.1} parent=1 // pred_region
      _
    $region13: #{tpu_custom_call.1} parent=1 // pred_fallthru
      _
    %v15 = vld [vmem:[%s2] sm:$0xff]
    %v16 = vld [vmem:[%s0] sm:$0xff]
    %v17 = vld [vmem:[%s0 + $0x8] sm:$0xff]
    %v18 = vld [vmem:[%s1] sm:$0xff]
    %v21 = vlaneseq
    %v22 = vshrl.u32 %v21, 7
    %v23 = vsub.s32 0, %v22
    %v24 = vrot.slane %v16, %v23
    %v25 = vlaneseq
    %v26 = vshrl.u32 %v25, 7
    %v27 = vsub.s32 4, %v26
    %v28 = vrot.slane %v16, %v27
    %v29 = vlaneseq
    %v30 = vshrl.u32 %v29, 7
    %v31 = vsub.s32 0, %v30
    %v32 = vrot.slane %v17, %v31
    %v33 = vlaneseq
    %v34 = vshrl.u32 %v33, 7
    %v35 = vsub.s32 4, %v34
    %v36 = vrot.slane %v17, %v35
    %v41 = vlaneseq
    %v42 = vshrl.u32 %v41, 7
    %v43 = vsub.s32 0, %v42
    %v44 = vrot.slane %v24, %v43
    %v45 = vlaneseq
    %v46 = vshrl.u32 %v45, 7
    %v47 = vsub.s32 0, %v46
    %v48 = vrot.slane %v28, %v47
    %v49 = vlaneseq
    %v50 = vshrl.u32 %v49, 7
    %v51 = vsub.s32 0, %v50
    %v52 = vrot.slane %v32, %v51
    %v53 = vlaneseq
    %v54 = vshrl.u32 %v53, 7
    %v55 = vsub.s32 0, %v54
    %v56 = vrot.slane %v36, %v55
    %58 = vset.pattern.permute.xlu0 0
    %59 = vperm.xlu0 %58, %v18
    %v60 = vpop.permute.xlu0 %59
    %v62 = vmul.f32 %v44, %v60
    %v63 = vmul.f32 %v48, %v60
    %v64 = vmul.f32 %v52, %v60
    %v65 = vmul.f32 %v56, %v60
    %v66 = vlaneseq
    %v67 = vshrl.u32 %v66, 7
    %v68 = vsub.s32 1, %v67
    %v69 = vrot.slane %v16, %v68
    %v70 = vlaneseq
    %v71 = vshrl.u32 %v70, 7
    %v72 = vsub.s32 5, %v71
    %v73 = vrot.slane %v16, %v72
    %v74 = vlaneseq
    %v75 = vshrl.u32 %v74, 7
    %v76 = vsub.s32 1, %v75
    %v77 = vrot.slane %v17, %v76
    %v78 = vlaneseq
    %v79 = vshrl.u32 %v78, 7
    %v80 = vsub.s32 5, %v79
    %v81 = vrot.slane %v17, %v80
    %v86 = vlaneseq
    %v87 = vshrl.u32 %v86, 7
    %v88 = vsub.s32 1, %v87
    %v89 = vrot.slane %v69, %v88
    %v90 = vlaneseq
    %v91 = vshrl.u32 %v90, 7
    %v92 = vsub.s32 1, %v91
    %v93 = vrot.slane %v73, %v92
    %v94 = vlaneseq
    %v95 = vshrl.u32 %v94, 7
    %v96 = vsub.s32 1, %v95
    %v97 = vrot.slane %v77, %v96
    %v98 = vlaneseq
    %v99 = vshrl.u32 %v98, 7
    %v100 = vsub.s32 1, %v99
    %v101 = vrot.slane %v81, %v100
    %102 = vset.pattern.permute.xlu0 1
    %103 = vperm.xlu0 %102, %v18
    %v104 = vpop.permute.xlu0 %103
    %v106 = vmul.f32 %v89, %v104
    %v107 = vmul.f32 %v93, %v104
    %v108 = vmul.f32 %v97, %v104
    %v109 = vmul.f32 %v101, %v104
    %v110 = vadd.f32 %v62, %v106
    %v111 = vadd.f32 %v63, %v107
    %v112 = vadd.f32 %v64, %v108
    %v113 = vadd.f32 %v65, %v109
    %v114 = vlaneseq
    %v115 = vshrl.u32 %v114, 7
    %v116 = vsub.s32 2, %v115
    %v117 = vrot.slane %v16, %v116
    %v118 = vlaneseq
    %v119 = vshrl.u32 %v118, 7
    %v120 = vsub.s32 6, %v119
    %v121 = vrot.slane %v16, %v120
    %v122 = vlaneseq
    %v123 = vshrl.u32 %v122, 7
    %v124 = vsub.s32 2, %v123
    %v125 = vrot.slane %v17, %v124
    %v126 = vlaneseq
    %v127 = vshrl.u32 %v126, 7
    %v128 = vsub.s32 6, %v127
    %v129 = vrot.slane %v17, %v128
    %v134 = vlaneseq
    %v135 = vshrl.u32 %v134, 7
    %v136 = vsub.s32 2, %v135
    %v137 = vrot.slane %v117, %v136
    %v138 = vlaneseq
    %v139 = vshrl.u32 %v138, 7
    %v140 = vsub.s32 2, %v139
    %v141 = vrot.slane %v121, %v140
    %v142 = vlaneseq
    %v143 = vshrl.u32 %v142, 7
    %v144 = vsub.s32 2, %v143
    %v145 = vrot.slane %v125, %v144
    %v146 = vlaneseq
    %v147 = vshrl.u32 %v146, 7
    %v148 = vsub.s32 2, %v147
    %v149 = vrot.slane %v129, %v148
    %150 = vset.pattern.permute.xlu0 2
    %151 = vperm.xlu0 %150, %v18
    %v152 = vpop.permute.xlu0 %151
    %v154 = vmul.f32 %v137, %v152
    %v155 = vmul.f32 %v141, %v152
    %v156 = vmul.f32 %v145, %v152
    %v157 = vmul.f32 %v149, %v152
    %v158 = vadd.f32 %v110, %v154
    %v159 = vadd.f32 %v111, %v155
    %v160 = vadd.f32 %v112, %v156
    %v161 = vadd.f32 %v113, %v157
    %v162 = vlaneseq
    %v163 = vshrl.u32 %v162, 7
    %v164 = vsub.s32 3, %v163
    %v165 = vrot.slane %v16, %v164
    %v166 = vlaneseq
    %v167 = vshrl.u32 %v166, 7
    %v168 = vsub.s32 7, %v167
    %v169 = vrot.slane %v16, %v168
    %v170 = vlaneseq
    %v171 = vshrl.u32 %v170, 7
    %v172 = vsub.s32 3, %v171
    %v173 = vrot.slane %v17, %v172
    %v174 = vlaneseq
    %v175 = vshrl.u32 %v174, 7
    %v176 = vsub.s32 7, %v175
    %v177 = vrot.slane %v17, %v176
    %v182 = vlaneseq
    %v183 = vshrl.u32 %v182, 7
    %v184 = vsub.s32 3, %v183
    %v185 = vrot.slane %v165, %v184
    %v186 = vlaneseq
    %v187 = vshrl.u32 %v186, 7
    %v188 = vsub.s32 3, %v187
    %v189 = vrot.slane %v169, %v188
    %v190 = vlaneseq
    %v191 = vshrl.u32 %v190, 7
    %v192 = vsub.s32 3, %v191
    %v193 = vrot.slane %v173, %v192
    %v194 = vlaneseq
    %v195 = vshrl.u32 %v194, 7
    %v196 = vsub.s32 3, %v195
    %v197 = vrot.slane %v177, %v196
    %198 = vset.pattern.permute.xlu0 3
    %199 = vperm.xlu0 %198, %v18
    %v200 = vpop.permute.xlu0 %199
    %v202 = vmul.f32 %v185, %v200
    %v203 = vmul.f32 %v189, %v200
    %v204 = vmul.f32 %v193, %v200
    %v205 = vmul.f32 %v197, %v200
    %v206 = vadd.f32 %v158, %v202
    %v207 = vadd.f32 %v159, %v203
    %v208 = vadd.f32 %v160, %v204
    %v209 = vadd.f32 %v161, %v205
    %211 = vset.pattern.permute.xlu0 0
    %212 = vperm.xlu0 %211, %v15
    %v213 = vpop.permute.xlu0 %212
    %v215 = vadd.f32 %v206, %v213
    %v216 = vadd.f32 %v207, %v213
    %v217 = vadd.f32 %v208, %v213
    %v218 = vadd.f32 %v209, %v213
    %219 = vst [vmem:[#allocation2] sm:$0xff] %v215
    %220 = vst [vmem:[#allocation2 + $0x8] sm:$0xff] %v216
    %221 = vst [vmem:[#allocation2 + $0x10] sm:$0xff] %v217
    %222 = vst [vmem:[#allocation2 + $0x18] sm:$0xff] %v218
    // Predicated region
    $region14: #{tpu_custom_call.1} parent=1 // pred_check
      _
    $region15: #{tpu_custom_call.1} parent=1 // pred_check_branch
      %224 = sbr.rel (0) target = $region17
    $region16: #{tpu_custom_call.1} parent=1 // pred_region
      %s226 = ssub.s32 512, 512
      %227 = vsyncadd [#allocation3], %s226
      %s228 = sshll.u32 [#allocation2], 4
      %s229 = int_to_ptr.vmem [resolvable:$true] %s228
      %234 = dma.vmem_to_hbm [thread:$0]  %s229, 512, %s3, [#allocation3], 256, 256, 16
    $region17: #{tpu_custom_call.1} parent=1 // pred_fallthru
      _
    // Predicated region
    $region18: #{tpu_custom_call.1} parent=1 // pred_check
      _
    $region19: #{tpu_custom_call.1} parent=1 // pred_check_branch
      %236 = sbr.rel (0) target = $region21
    $region20: #{tpu_custom_call.1} parent=1 // pred_region
      %237 = dma.done [#allocation3], 512
    $region21: #{tpu_custom_call.1} parent=1 // pred_fallthru
      _
    %238 = vsyncpa [#allocation3], 1

</llo_original>
